<compile_context>
chip_gen: v7x
topology: tpu7x:2x2x1
jax: 0.10.0
libtpu: 0.0.40
codegen_flags: <defaults>
</compile_context>

<pallas_src>
import functools

import jax
import jax.numpy as jnp
from jax import lax
from jax.experimental import pallas as pl
from jax.experimental.pallas import tpu as pltpu

LN_EPS = 1e-5
HIDDEN = 64          # module's hidden width
HIDDEN_PAD = 128     # padded to a full lane width (compute-neutral on the MXU)


def _round_up(x, m):
    return (x + m - 1) // m * m


def _is_v7x():
    """Best-effort detection of a 2-TensorCore (v7x) part; False on any doubt."""
    try:
        kind = jax.devices()[0].device_kind.lower()
        return ("v7" in kind) or ("7x" in kind)
    except Exception:
        return False


def _mlp_encoder_kernel(x_ref, w1_ref, b1_ref, w2_ref, b2_ref, w3_ref, b3_ref,
                        gamma_ref, beta_ref, o_ref, *, latent_dim):
    # Cast to the MXU input dtype *inside* the kernel (no wrapper-side cast pass).
    x = x_ref[...].astype(w1_ref.dtype)

    # Linear 1 + ReLU (MXU matmul, f32 accumulation; bias/ReLU on the VPU in f32)
    h = jnp.dot(x, w1_ref[...], preferred_element_type=jnp.float32) + b1_ref[...]
    h = jnp.maximum(h, 0.0)

    # Linear 2 + ReLU
    h = jnp.dot(h.astype(w2_ref.dtype), w2_ref[...],
                preferred_element_type=jnp.float32) + b2_ref[...]
    h = jnp.maximum(h, 0.0)

    # Linear 3 -> (tile_b, latent_dim). Compact output columns: no padding.
    h = jnp.dot(h.astype(w3_ref.dtype), w3_ref[...],
                preferred_element_type=jnp.float32) + b3_ref[...]

    # LayerNorm over latent_dim columns: one-pass E[x^2] - mean^2 in f32.
    # (h is exactly latent_dim wide, so no column mask is required.)
    inv_n = 1.0 / latent_dim
    mean = jnp.sum(h, axis=-1, keepdims=True) * inv_n
    ex2 = jnp.sum(h * h, axis=-1, keepdims=True) * inv_n
    var = jnp.maximum(ex2 - mean * mean, 0.0)   # guard tiny negative cancellation
    normed = (h - mean) * lax.rsqrt(var + LN_EPS)

    # Compact (tile_b, latent_dim) store: output HBM stream carries exactly the
    # model's bytes (no padded-column writeback, no wrapper slice pass).
    o_ref[...] = (normed * gamma_ref[...] + beta_ref[...]).astype(o_ref.dtype)


def mlp_encoder(obs, prepared_params, latent_dim, *, tile_b=2048,
                core_parallel=None, out_dtype=jnp.float32,
                vmem_limit_bytes=32 * 1024 * 1024):
    """obs: [B, D] float32. Returns [B, latent_dim] (default float32).

    `prepared_params` must come from `prepare_params` (padded / dtype-converted).
    On v5e, passing out_dtype=jnp.bfloat16 further halves output writeback if the
    consumer tolerates bf16.
    """
    B, D = obs.shape
    w1, b1, w2, b2, w3, b3, gamma, beta = prepared_params

    # Batch tile: large enough to amortize the ~0.35 us/step grid overhead,
    # clamped to the (sublane-rounded) batch. 2048 is safe for v7x's 64 MiB VMEM;
    # v5e/v6e (128 MiB parts) can take tile_b=4096 if desired.
    tile_b = min(tile_b, _round_up(B, 8))
    tile_b = max(8, _round_up(tile_b, 8))
    num_tiles = pl.cdiv(B, tile_b)
    grid = (num_tiles,)

    # Batch axis is embarrassingly parallel. On v7x, CORE_PARALLEL actually shards
    # the grid across the 2 TensorCores; plain "parallel" vs "arbitrary" does not
    # change codegen on single-TC parts, so it stays the safe default there.
    if core_parallel is None:
        core_parallel = _is_v7x() and num_tiles >= 2
    batch_sem = pltpu.CORE_PARALLEL if core_parallel else "parallel"

    x_spec = pl.BlockSpec((tile_b, D), lambda i: (i, 0))
    out_spec = pl.BlockSpec((tile_b, latent_dim), lambda i: (i, 0))
    # Constant index_map -> block index never changes, so the pipeline DMAs these
    # once and they stay resident in VMEM across all grid steps.
    const = lambda shape: pl.BlockSpec(shape, lambda i: (0, 0))

    kernel = functools.partial(_mlp_encoder_kernel, latent_dim=latent_dim)

    # Advisory cost estimate (original, unpadded dims; real byte counts).
    flops = 2 * B * (D * HIDDEN + HIDDEN * HIDDEN + HIDDEN * latent_dim)
    bytes_accessed = int(
        B * D * obs.dtype.itemsize
        + B * latent_dim * jnp.dtype(out_dtype).itemsize
        + sum(int(p.size) * p.dtype.itemsize for p in prepared_params))

    return pl.pallas_call(
        kernel,
        out_shape=jax.ShapeDtypeStruct((B, latent_dim), out_dtype),
        grid_spec=pltpu.PrefetchScalarGridSpec(
            num_scalar_prefetch=0,
            grid=grid,
            in_specs=[
                x_spec,
                const(w1.shape), const(b1.shape),
                const(w2.shape), const(b2.shape),
                const(w3.shape), const(b3.shape),
                const(gamma.shape), const(beta.shape),
            ],
            out_specs=out_spec,
        ),
        compiler_params=pltpu.CompilerParams(
            dimension_semantics=(batch_sem,),
            # Fits v7x's 64 MiB physical VMEM with headroom; per-step footprint is
            # only a few MiB even at tile_b=2048.
            vmem_limit_bytes=vmem_limit_bytes,
        ),
        cost_estimate=pl.CostEstimate(
            flops=flops, transcendentals=B, bytes_accessed=bytes_accessed),
    )(obs, w1, b1, w2, b2, w3, b3, gamma, beta)


def init_params(key, obs_dim, latent_dim):
    """PyTorch-default-like init (uniform(-1/sqrt(fan_in), 1/sqrt(fan_in)));
    LayerNorm gamma=1, beta=0. Natural (unpadded) f32 shapes, W as [in, out]."""
    ks = jax.random.split(key, 6)

    def linear(kw, kb, fan_in, fan_out):
        bound = 1.0 / jnp.sqrt(fan_in)
        w = jax.random.uniform(kw, (fan_in, fan_out), jnp.float32, -bound, bound)
        b = jax.random.uniform(kb, (1, fan_out), jnp.float32, -bound, bound)
        return w, b

    w1, b1 = linear(ks[0], ks[1], obs_dim, HIDDEN)
    w2, b2 = linear(ks[2], ks[3], HIDDEN, HIDDEN)
    w3, b3 = linear(ks[4], ks[5], HIDDEN, latent_dim)
    gamma = jnp.ones((1, latent_dim), jnp.float32)
    beta = jnp.zeros((1, latent_dim), jnp.float32)
    return (w1, b1, w2, b2, w3, b3, gamma, beta)


def prepare_params(params, *, use_bf16=True):
    """One-time preprocessing: zero-pad the hidden width 64 -> 128 so all matmul
    operands are lane-dense (w3's output columns stay compact = latent_dim);
    optionally cast weight matrices to bf16 for the MXU (biases / LN affine f32)."""
    w1, b1, w2, b2, w3, b3, gamma, beta = params
    D = w1.shape[0]
    latent_dim = w3.shape[1]
    w_dtype = jnp.bfloat16 if use_bf16 else jnp.float32

    def pad2(a, rows, cols):
        return jnp.pad(a, ((0, rows - a.shape[0]), (0, cols - a.shape[1])))

    w1p = pad2(w1, D, HIDDEN_PAD).astype(w_dtype)
    b1p = pad2(b1, 1, HIDDEN_PAD).astype(jnp.float32)
    w2p = pad2(w2, HIDDEN_PAD, HIDDEN_PAD).astype(w_dtype)
    b2p = pad2(b2, 1, HIDDEN_PAD).astype(jnp.float32)
    w3p = pad2(w3, HIDDEN_PAD, latent_dim).astype(w_dtype)   # rows padded only
    b3p = b3.astype(jnp.float32)
    gammap = gamma.astype(jnp.float32)
    betap = beta.astype(jnp.float32)
    return (w1p, b1p, w2p, b2p, w3p, b3p, gammap, betap)


def mlp_encoder_ref(obs, params):
    """Pure-JAX f32 reference that mirrors the PyTorch module exactly."""
    w1, b1, w2, b2, w3, b3, gamma, beta = params
    h = jnp.maximum(obs @ w1 + b1, 0.0)
    h = jnp.maximum(h @ w2 + b2, 0.0)
    h = h @ w3 + b3
    mean = jnp.mean(h, axis=-1, keepdims=True)
    var = jnp.mean(jnp.square(h - mean), axis=-1, keepdims=True)
    return (h - mean) * lax.rsqrt(var + LN_EPS) * gamma + beta


def mlp_encoder_ref_matched(obs, prepared_params):
    """Pure-JAX reference doing the same bf16-in / f32-acc math as the kernel
    (two-pass LN), for a tight numerical check."""
    w1, b1, w2, b2, w3, b3, gamma, beta = prepared_params
    x = obs.astype(w1.dtype)
    h = jnp.dot(x, w1, preferred_element_type=jnp.float32) + b1
    h = jnp.maximum(h, 0.0)
    h = jnp.dot(h.astype(w2.dtype), w2, preferred_element_type=jnp.float32) + b2
    h = jnp.maximum(h, 0.0)
    h = jnp.dot(h.astype(w3.dtype), w3, preferred_element_type=jnp.float32) + b3
    mean = jnp.mean(h, axis=-1, keepdims=True)
    var = jnp.mean(jnp.square(h - mean), axis=-1, keepdims=True)
    return (h - mean) * lax.rsqrt(var + LN_EPS) * gamma + beta


if __name__ == "__main__":
    key = jax.random.PRNGKey(0)
    k_obs, k_obs2, k_params = jax.random.split(key, 3)

    obs_dim, latent_dim = 16, 32   # obs_shape = (16,)
    params = init_params(k_params, obs_dim, latent_dim)
    prepared = prepare_params(params, use_bf16=True)

    # Small single-block case (batch=8).
    obs = jax.random.normal(k_obs, (8, obs_dim), jnp.float32)
    out = jax.block_until_ready(mlp_encoder(obs, prepared, latent_dim))
    assert out.shape == (8, latent_dim)

    # Tight check against a reference doing identical bf16-in / f32-acc math.
    ref_matched = jax.block_until_ready(mlp_encoder_ref_matched(obs, prepared))
    assert jnp.allclose(out, ref_matched, atol=1e-4, rtol=1e-4), (
        jnp.max(jnp.abs(out - ref_matched)))

    # Looser check against the exact f32 PyTorch-equivalent reference
    # (difference is only the bf16 quantization of the matmul inputs).
    ref_f32 = jax.block_until_ready(mlp_encoder_ref(obs, params))
    assert jnp.allclose(out, ref_f32, atol=5e-2, rtol=5e-2), (
        jnp.max(jnp.abs(out - ref_f32)))

    # Multi-step grid with a partial last block (exercises the pipelined path
    # and the masked writeback of the final tile).
    obs2 = jax.random.normal(k_obs2, (200, obs_dim), jnp.float32)
    out2 = jax.block_until_ready(mlp_encoder(obs2, prepared, latent_dim, tile_b=128))
    ref2 = jax.block_until_ready(mlp_encoder_ref_matched(obs2, prepared))
    assert out2.shape == (200, latent_dim)
    assert jnp.allclose(out2, ref2, atol=1e-4, rtol=1e-4), (
        jnp.max(jnp.abs(out2 - ref2)))

    print("KERNEL_OK")
</pallas_src>

<mosaic_0001>
module attributes {stable_mosaic.version = 11 : i64} {
  func.func @_mlp_encoder_kernel(%arg0: i32, %arg1: memref<8x16xf32, #tpu.memory_space<vmem>>, %arg2: memref<16x128xbf16, #tpu.memory_space<vmem>>, %arg3: memref<1x128xf32, #tpu.memory_space<vmem>>, %arg4: memref<128x128xbf16, #tpu.memory_space<vmem>>, %arg5: memref<1x128xf32, #tpu.memory_space<vmem>>, %arg6: memref<128x32xbf16, #tpu.memory_space<vmem>>, %arg7: memref<1x32xf32, #tpu.memory_space<vmem>>, %arg8: memref<1x32xf32, #tpu.memory_space<vmem>>, %arg9: memref<1x32xf32, #tpu.memory_space<vmem>>, %arg10: memref<8x32xf32, #tpu.memory_space<vmem>>) attributes {dimension_semantics = [#tpu.dimension_semantics<parallel>], iteration_bounds = array<i64: 1>, scalar_prefetch = 0 : i64, scratch_operands = 0 : i64, tpu.core_type = #tpu.core_type<tc>, window_params = [{transform_indices = @transform_0, window_bounds = array<i64: 8, 16>}, {pipeline_mode = #tpu.pipeline_mode<synchronous>, transform_indices = @transform_1, window_bounds = array<i64: 16, 128>}, {pipeline_mode = #tpu.pipeline_mode<synchronous>, transform_indices = @transform_2, window_bounds = array<i64: 1, 128>}, {pipeline_mode = #tpu.pipeline_mode<synchronous>, transform_indices = @transform_3, window_bounds = array<i64: 128, 128>}, {pipeline_mode = #tpu.pipeline_mode<synchronous>, transform_indices = @transform_4, window_bounds = array<i64: 1, 128>}, {pipeline_mode = #tpu.pipeline_mode<synchronous>, transform_indices = @transform_5, window_bounds = array<i64: 128, 32>}, {pipeline_mode = #tpu.pipeline_mode<synchronous>, transform_indices = @transform_6, window_bounds = array<i64: 1, 32>}, {pipeline_mode = #tpu.pipeline_mode<synchronous>, transform_indices = @transform_7, window_bounds = array<i64: 1, 32>}, {pipeline_mode = #tpu.pipeline_mode<synchronous>, transform_indices = @transform_8, window_bounds = array<i64: 1, 32>}, {transform_indices = @transform_9, window_bounds = array<i64: 8, 32>}]} {
    %c0 = arith.constant 0 : index
    %c0_0 = arith.constant 0 : index
    %0 = vector.load %arg1[%c0, %c0_0] : memref<8x16xf32, #tpu.memory_space<vmem>>, vector<8x16xf32>
    %1 = arith.truncf %0 : vector<8x16xf32> to vector<8x16xbf16>
    %c0_1 = arith.constant 0 : index
    %c0_2 = arith.constant 0 : index
    %2 = vector.load %arg2[%c0_1, %c0_2] : memref<16x128xbf16, #tpu.memory_space<vmem>>, vector<16x128xbf16>
    %cst = arith.constant dense<0.000000e+00> : vector<8x128xf32>
    %3 = tpu.matmul %1, %2, %cst {dimension_numbers = #tpu.dot_dimension_numbers<[1], [0], [0], [1], [0, 0, 1, 1], [], []>} : vector<8x16xbf16>, vector<16x128xbf16>, vector<8x128xf32> -> vector<8x128xf32>
    %c0_3 = arith.constant 0 : index
    %c0_4 = arith.constant 0 : index
    %4 = vector.load %arg3[%c0_3, %c0_4] : memref<1x128xf32, #tpu.memory_space<vmem>>, vector<1x128xf32>
    %5 = vector.broadcast %4 : vector<1x128xf32> to vector<8x128xf32>
    %6 = arith.addf %3, %5 : vector<8x128xf32>
    %cst_5 = arith.constant 0.000000e+00 : f32
    %7 = vector.broadcast %cst_5 : f32 to vector<8x128xf32>
    %8 = arith.maximumf %6, %7 : vector<8x128xf32>
    %9 = arith.truncf %8 : vector<8x128xf32> to vector<8x128xbf16>
    %c0_6 = arith.constant 0 : index
    %c0_7 = arith.constant 0 : index
    %10 = vector.load %arg4[%c0_6, %c0_7] : memref<128x128xbf16, #tpu.memory_space<vmem>>, vector<128x128xbf16>
    %cst_8 = arith.constant dense<0.000000e+00> : vector<8x128xf32>
    %11 = tpu.matmul %9, %10, %cst_8 {dimension_numbers = #tpu.dot_dimension_numbers<[1], [0], [0], [1], [0, 0, 1, 1], [], []>} : vector<8x128xbf16>, vector<128x128xbf16>, vector<8x128xf32> -> vector<8x128xf32>
    %c0_9 = arith.constant 0 : index
    %c0_10 = arith.constant 0 : index
    %12 = vector.load %arg5[%c0_9, %c0_10] : memref<1x128xf32, #tpu.memory_space<vmem>>, vector<1x128xf32>
    %13 = vector.broadcast %12 : vector<1x128xf32> to vector<8x128xf32>
    %14 = arith.addf %11, %13 : vector<8x128xf32>
    %cst_11 = arith.constant 0.000000e+00 : f32
    %15 = vector.broadcast %cst_11 : f32 to vector<8x128xf32>
    %16 = arith.maximumf %14, %15 : vector<8x128xf32>
    %17 = arith.truncf %16 : vector<8x128xf32> to vector<8x128xbf16>
    %c0_12 = arith.constant 0 : index
    %c0_13 = arith.constant 0 : index
    %18 = vector.load %arg6[%c0_12, %c0_13] : memref<128x32xbf16, #tpu.memory_space<vmem>>, vector<128x32xbf16>
    %cst_14 = arith.constant dense<0.000000e+00> : vector<8x32xf32>
    %19 = tpu.matmul %17, %18, %cst_14 {dimension_numbers = #tpu.dot_dimension_numbers<[1], [0], [0], [1], [0, 0, 1, 1], [], []>} : vector<8x128xbf16>, vector<128x32xbf16>, vector<8x32xf32> -> vector<8x32xf32>
    %c0_15 = arith.constant 0 : index
    %c0_16 = arith.constant 0 : index
    %20 = vector.load %arg7[%c0_15, %c0_16] : memref<1x32xf32, #tpu.memory_space<vmem>>, vector<1x32xf32>
    %21 = vector.broadcast %20 : vector<1x32xf32> to vector<8x32xf32>
    %22 = arith.addf %19, %21 : vector<8x32xf32>
    %cst_17 = arith.constant dense<0.000000e+00> : vector<8xf32>
    %23 = vector.multi_reduction <add>, %22, %cst_17 [1] : vector<8x32xf32> to vector<8xf32>
    %24 = vector.shape_cast %23 : vector<8xf32> to vector<8x1xf32>
    %cst_18 = arith.constant 3.125000e-02 : f32
    %25 = vector.broadcast %cst_18 : f32 to vector<8x1xf32>
    %26 = arith.mulf %24, %25 : vector<8x1xf32>
    %27 = arith.mulf %22, %22 : vector<8x32xf32>
    %cst_19 = arith.constant dense<0.000000e+00> : vector<8xf32>
    %28 = vector.multi_reduction <add>, %27, %cst_19 [1] : vector<8x32xf32> to vector<8xf32>
    %29 = vector.shape_cast %28 : vector<8xf32> to vector<8x1xf32>
    %cst_20 = arith.constant 3.125000e-02 : f32
    %30 = vector.broadcast %cst_20 : f32 to vector<8x1xf32>
    %31 = arith.mulf %29, %30 : vector<8x1xf32>
    %32 = arith.mulf %26, %26 : vector<8x1xf32>
    %33 = arith.subf %31, %32 : vector<8x1xf32>
    %cst_21 = arith.constant 0.000000e+00 : f32
    %34 = vector.broadcast %cst_21 : f32 to vector<8x1xf32>
    %35 = arith.maximumf %33, %34 : vector<8x1xf32>
    %36 = vector.broadcast %26 : vector<8x1xf32> to vector<8x32xf32>
    %37 = arith.subf %22, %36 : vector<8x32xf32>
    %cst_22 = arith.constant 9.99999974E-6 : f32
    %38 = vector.broadcast %cst_22 : f32 to vector<8x1xf32>
    %39 = arith.addf %35, %38 : vector<8x1xf32>
    %40 = math.rsqrt %39 : vector<8x1xf32>
    %41 = vector.broadcast %40 : vector<8x1xf32> to vector<8x32xf32>
    %42 = arith.mulf %37, %41 : vector<8x32xf32>
    %c0_23 = arith.constant 0 : index
    %c0_24 = arith.constant 0 : index
    %43 = vector.load %arg8[%c0_23, %c0_24] : memref<1x32xf32, #tpu.memory_space<vmem>>, vector<1x32xf32>
    %44 = vector.broadcast %43 : vector<1x32xf32> to vector<8x32xf32>
    %45 = arith.mulf %42, %44 : vector<8x32xf32>
    %c0_25 = arith.constant 0 : index
    %c0_26 = arith.constant 0 : index
    %46 = vector.load %arg9[%c0_25, %c0_26] : memref<1x32xf32, #tpu.memory_space<vmem>>, vector<1x32xf32>
    %47 = vector.broadcast %46 : vector<1x32xf32> to vector<8x32xf32>
    %48 = arith.addf %45, %47 : vector<8x32xf32>
    %c0_27 = arith.constant 0 : index
    %c0_28 = arith.constant 0 : index
    %49 = vector.load %arg10[%c0_27, %c0_28] : memref<8x32xf32, #tpu.memory_space<vmem>>, vector<8x32xf32>
    tpu.vector_store %arg10[%c0_27, %c0_28], %48 {strides = array<i32>} : memref<8x32xf32, #tpu.memory_space<vmem>>, vector<8x32xf32>,
    return
  }
  func.func @transform_0(%arg0: i32) -> (i32, i32) {
    %c0_i32 = arith.constant 0 : i32
    %c0_i32_0 = arith.constant 0 : i32
    return %arg0, %c0_i32 : i32, i32
  }
  func.func @transform_1(%arg0: i32) -> (i32, i32) {
    %c0_i32 = arith.constant 0 : i32
    %c0_i32_0 = arith.constant 0 : i32
    %c0_i32_1 = arith.constant 0 : i32
    return %c0_i32, %c0_i32_0 : i32, i32
  }
  func.func @transform_2(%arg0: i32) -> (i32, i32) {
    %c0_i32 = arith.constant 0 : i32
    %c0_i32_0 = arith.constant 0 : i32
    %c0_i32_1 = arith.constant 0 : i32
    return %c0_i32, %c0_i32_0 : i32, i32
  }
  func.func @transform_3(%arg0: i32) -> (i32, i32) {
    %c0_i32 = arith.constant 0 : i32
    %c0_i32_0 = arith.constant 0 : i32
    %c0_i32_1 = arith.constant 0 : i32
    return %c0_i32, %c0_i32_0 : i32, i32
  }
  func.func @transform_4(%arg0: i32) -> (i32, i32) {
    %c0_i32 = arith.constant 0 : i32
    %c0_i32_0 = arith.constant 0 : i32
    %c0_i32_1 = arith.constant 0 : i32
    return %c0_i32, %c0_i32_0 : i32, i32
  }
  func.func @transform_5(%arg0: i32) -> (i32, i32) {
    %c0_i32 = arith.constant 0 : i32
    %c0_i32_0 = arith.constant 0 : i32
    %c0_i32_1 = arith.constant 0 : i32
    return %c0_i32, %c0_i32_0 : i32, i32
  }
  func.func @transform_6(%arg0: i32) -> (i32, i32) {
    %c0_i32 = arith.constant 0 : i32
    %c0_i32_0 = arith.constant 0 : i32
    %c0_i32_1 = arith.constant 0 : i32
    return %c0_i32, %c0_i32_0 : i32, i32
  }
  func.func @transform_7(%arg0: i32) -> (i32, i32) {
    %c0_i32 = arith.constant 0 : i32
    %c0_i32_0 = arith.constant 0 : i32
    %c0_i32_1 = arith.constant 0 : i32
    return %c0_i32, %c0_i32_0 : i32, i32
  }
  func.func @transform_8(%arg0: i32) -> (i32, i32) {
    %c0_i32 = arith.constant 0 : i32
    %c0_i32_0 = arith.constant 0 : i32
    %c0_i32_1 = arith.constant 0 : i32
    return %c0_i32, %c0_i32_0 : i32, i32
  }
  func.func @transform_9(%arg0: i32) -> (i32, i32) {
    %c0_i32 = arith.constant 0 : i32
    %c0_i32_0 = arith.constant 0 : i32
    return %arg0, %c0_i32 : i32, i32
  }
}

</mosaic_0001>

<llo_original>
// kernel: tpu_custom_call.1
$region0: #{tpu_custom_call.1}
  #allocation0 [shape = 'u32[]', space=smem, size = 0x4, offset = 0x4, fixed_abs, tag = 'smem constant byte address 0x4 - core index']
  #allocation1 [shape = 'u32[144,128]{1,0:T(1,128)}', space=vmem, size = 0x12000, scoped, tag = 'internal scratch']
  %s0 = inlined_call_operand.vmem [shape: f32[8,16], index: 0, kind: input, shape index: {}]
  %s1 = inlined_call_operand.vmem [shape: bf16[16,128], index: 1, kind: input, shape index: {}]
  %s2 = inlined_call_operand.vmem [shape: f32[1,128], index: 2, kind: input, shape index: {}]
  %s3 = inlined_call_operand.vmem [shape: bf16[128,128], index: 3, kind: input, shape index: {}]
  %s4 = inlined_call_operand.vmem [shape: f32[1,128], index: 4, kind: input, shape index: {}]
  %s5 = inlined_call_operand.vmem [shape: bf16[128,32], index: 5, kind: input, shape index: {}]
  %s6 = inlined_call_operand.vmem [shape: f32[1,32], index: 6, kind: input, shape index: {}]
  %s7 = inlined_call_operand.vmem [shape: f32[1,32], index: 7, kind: input, shape index: {}]
  %s8 = inlined_call_operand.vmem [shape: f32[1,32], index: 8, kind: input, shape index: {}]
  %s9 = inlined_call_operand.hbm [shape: f32[8,32], index: 9, kind: output, shape index: {}]
  %s10 = sld [smem:[#allocation0]]
  $region46: #{tpu_custom_call.1} parent=0
    _
  %s12 = ssub.s32 1, %s10
  %s13 = scalar_select 0, %s12, %s10
  $region1: #{tpu_custom_call.1} parent=0
    #allocation2 [shape = 'u8[4096]{0}', space=vmem, size = 0x1000, scoped, tag = 'output window, operand 0, single buffered']
    #allocation3 [shape = 's32[1]{0}', space=sflag, size = 0x4, scoped, tag = 'scoped memory for tpu_custom_call.1']
    %14 = vsyncpa [#allocation3], 0
    // Predicated region
    $region2: #{tpu_custom_call.1} parent=1 // pred_check
      _
    $region3: #{tpu_custom_call.1} parent=1 // pred_check_branch
      %16 = sbr.rel (0) target = $region5
    $region4: #{tpu_custom_call.1} parent=1 // pred_region
      _
    $region5: #{tpu_custom_call.1} parent=1 // pred_fallthru
      _
    // Predicated region
    $region6: #{tpu_custom_call.1} parent=1 // pred_check
      _
    $region7: #{tpu_custom_call.1} parent=1 // pred_check_branch
      %18 = sbr.rel (0) target = $region9
    $region8: #{tpu_custom_call.1} parent=1 // pred_region
      _
    $region9: #{tpu_custom_call.1} parent=1 // pred_fallthru
      _
    // Predicated region
    $region10: #{tpu_custom_call.1} parent=1 // pred_check
      _
    $region11: #{tpu_custom_call.1} parent=1 // pred_check_branch
      %20 = sbr.rel (0) target = $region13
    $region12: #{tpu_custom_call.1} parent=1 // pred_region
      _
    $region13: #{tpu_custom_call.1} parent=1 // pred_fallthru
      _
    // Predicated region
    $region14: #{tpu_custom_call.1} parent=1 // pred_check
      _
    $region15: #{tpu_custom_call.1} parent=1 // pred_check_branch
      %22 = sbr.rel (0) target = $region17
    $region16: #{tpu_custom_call.1} parent=1 // pred_region
      _
    $region17: #{tpu_custom_call.1} parent=1 // pred_fallthru
      _
    // Predicated region
    $region18: #{tpu_custom_call.1} parent=1 // pred_check
      _
    $region19: #{tpu_custom_call.1} parent=1 // pred_check_branch
      %24 = sbr.rel (0) target = $region21
    $region20: #{tpu_custom_call.1} parent=1 // pred_region
      _
    $region21: #{tpu_custom_call.1} parent=1 // pred_fallthru
      _
    // Predicated region
    $region22: #{tpu_custom_call.1} parent=1 // pred_check
      _
    $region23: #{tpu_custom_call.1} parent=1 // pred_check_branch
      %26 = sbr.rel (0) target = $region25
    $region24: #{tpu_custom_call.1} parent=1 // pred_region
      _
    $region25: #{tpu_custom_call.1} parent=1 // pred_fallthru
      _
    // Predicated region
    $region26: #{tpu_custom_call.1} parent=1 // pred_check
      _
    $region27: #{tpu_custom_call.1} parent=1 // pred_check_branch
      %28 = sbr.rel (0) target = $region29
    $region28: #{tpu_custom_call.1} parent=1 // pred_region
      _
    $region29: #{tpu_custom_call.1} parent=1 // pred_fallthru
      _
    // Predicated region
    $region30: #{tpu_custom_call.1} parent=1 // pred_check
      _
    $region31: #{tpu_custom_call.1} parent=1 // pred_check_branch
      %30 = sbr.rel (0) target = $region33
    $region32: #{tpu_custom_call.1} parent=1 // pred_region
      _
    $region33: #{tpu_custom_call.1} parent=1 // pred_fallthru
      _
    // Predicated region
    $region34: #{tpu_custom_call.1} parent=1 // pred_check
      _
    $region35: #{tpu_custom_call.1} parent=1 // pred_check_branch
      %32 = sbr.rel (0) target = $region37
    $region36: #{tpu_custom_call.1} parent=1 // pred_region
      _
    $region37: #{tpu_custom_call.1} parent=1 // pred_fallthru
      _
    %v34 = vld [vmem:[%s0] sm:$0xff]
    %v35 = vpack.c.bf16 %v34, %v34
    %v36 = vld [vmem:[%s1] sm:$0xf]
    %v37 = vld [vmem:[%s1 + $0x4] sm:$0xf]
    %v38 = vld [vmem:[%s2] sm:$0x1]
    %v40 = vlaneseq
    %v41 = vshrl.u32 %v40, 7
    %v42 = vsub.s32 0, %v41
    %v43 = vrot.slane %v38, %v42
    %v47 = vunpack.c.l.b16 %v36
    %v48 = vunpack.c.l.b16 %v37
    %v49 = vpack.c.b16 %v48, %v47
    %vm51 = vcmask 130048
    %v53 = vsel %vm51, %v35, 0
    %55 = vmatprep.subr.bf16.mxu0 0
    %56 = vmatpush1.bf16.msra.mxu0 %v49
    %57 = vmatprep.subr.bf16.mxu0 0
    %58 = vmatpush1.bf16.msra.mxu0 0
    %59 = vmatprep.subr.bf16.mxu0 0
    %60 = vmatpush1.bf16.msra.mxu0 0
    %61 = vmatprep.subr.bf16.mxu0 0
    %62 = vmatpush1.bf16.msra.mxu0 0
    %63 = vmatprep.subr.bf16.mxu0 0
    %64 = vmatpush1.bf16.msra.mxu0 0
    %65 = vmatprep.subr.bf16.mxu0 0
    %66 = vmatpush1.bf16.msra.mxu0 0
    %67 = vmatprep.subr.bf16.mxu0 0
    %68 = vmatpush1.bf16.msra.mxu0 0
    %69 = vmatprep.subr.bf16.mxu0 0
    %70 = vmatpush1.bf16.msra.mxu0 0
    %71 = vmatprep.subr.bf16.mxu0 0
    %72 = vmatpush1.bf16.msra.mxu0 0
    %73 = vmatprep.subr.bf16.mxu0 0
    %74 = vmatpush1.bf16.msra.mxu0 0
    %75 = vmatprep.subr.bf16.mxu0 0
    %76 = vmatpush1.bf16.msra.mxu0 0
    %77 = vmatprep.subr.bf16.mxu0 0
    %78 = vmatpush1.bf16.msra.mxu0 0
    %79 = vmatprep.subr.bf16.mxu0 0
    %80 = vmatpush1.bf16.msra.mxu0 0
    %81 = vmatprep.subr.bf16.mxu0 0
    %82 = vmatpush1.bf16.msra.mxu0 0
    %83 = vmatprep.subr.bf16.mxu0 0
    %84 = vmatpush1.bf16.msra.mxu0 0
    %85 = vmatprep.subr.bf16.mxu0 0
    %86 = vmatpush1.bf16.msra.mxu0 0
    %87 = vmatprep.mubr.bf16.mxu0 0
    %88 = vmatmul.mubr.bf16.gmra.mrb[0].mxu0 %v53
    %v89 = vpop.f32.mrb[0].mxu0
    %v90 = vadd.f32 %v43, %v89
    %v91 = vpop.f32.mrb[0].mxu0
    %v92 = vpop.f32.mrb[0].mxu0
    %v93 = vpop.f32.mrb[0].mxu0
    %94 = vdwg.mxu0
    %v95 = vmax.f32 %v90, 0.0
    %v96 = vpack.c.bf16 %v95, %v95
    %v97 = vld [vmem:[%s3] sm:$0xf]
    %v98 = vld [vmem:[%s3 + $0x4] sm:$0xf]
    %v99 = vld [vmem:[%s3 + $0x8] sm:$0xf]
    %v100 = vld [vmem:[%s3 + $0xc] sm:$0xf]
    %v101 = vld [vmem:[%s3 + $0x10] sm:$0xf]
    %v102 = vld [vmem:[%s3 + $0x14] sm:$0xf]
    %v103 = vld [vmem:[%s3 + $0x18] sm:$0xf]
    %v104 = vld [vmem:[%s3 + $0x1c] sm:$0xf]
    %v105 = vld [vmem:[%s3 + $0x20] sm:$0xf]
    %v106 = vld [vmem:[%s3 + $0x24] sm:$0xf]
    %v107 = vld [vmem:[%s3 + $0x28] sm:$0xf]
    %v108 = vld [vmem:[%s3 + $0x2c] sm:$0xf]
    %v109 = vld [vmem:[%s3 + $0x30] sm:$0xf]
    %v110 = vld [vmem:[%s3 + $0x34] sm:$0xf]
    %v111 = vld [vmem:[%s3 + $0x38] sm:$0xf]
    %v112 = vld [vmem:[%s3 + $0x3c] sm:$0xf]
    %v113 = vld [vmem:[%s4] sm:$0x1]
    %v115 = vlaneseq
    %v116 = vshrl.u32 %v115, 7
    %v117 = vsub.s32 0, %v116
    %v118 = vrot.slane %v113, %v117
    %v136 = vunpack.c.l.b16 %v97
    %v137 = vunpack.c.l.b16 %v98
    %v138 = vunpack.c.l.b16 %v99
    %v139 = vunpack.c.l.b16 %v100
    %v140 = vunpack.c.l.b16 %v101
    %v141 = vunpack.c.l.b16 %v102
    %v142 = vunpack.c.l.b16 %v103
    %v143 = vunpack.c.l.b16 %v104
    %v144 = vunpack.c.l.b16 %v105
    %v145 = vunpack.c.l.b16 %v106
    %v146 = vunpack.c.l.b16 %v107
    %v147 = vunpack.c.l.b16 %v108
    %v148 = vunpack.c.l.b16 %v109
    %v149 = vunpack.c.l.b16 %v110
    %v150 = vunpack.c.l.b16 %v111
    %v151 = vunpack.c.l.b16 %v112
    %v152 = vpack.c.b16 %v137, %v136
    %v153 = vpack.c.b16 %v139, %v138
    %v154 = vpack.c.b16 %v141, %v140
    %v155 = vpack.c.b16 %v143, %v142
    %v156 = vpack.c.b16 %v145, %v144
    %v157 = vpack.c.b16 %v147, %v146
    %v158 = vpack.c.b16 %v149, %v148
    %v159 = vpack.c.b16 %v151, %v150
    %168 = vmatprep.subr.bf16.mxu0 0
    %169 = vmatpush1.bf16.msra.mxu0 %v152
    %170 = vmatprep.subr.bf16.mxu0 0
    %171 = vmatpush1.bf16.msra.mxu0 %v153
    %172 = vmatprep.subr.bf16.mxu0 0
    %173 = vmatpush1.bf16.msra.mxu0 %v154
    %174 = vmatprep.subr.bf16.mxu0 0
    %175 = vmatpush1.bf16.msra.mxu0 %v155
    %176 = vmatprep.subr.bf16.mxu0 0
    %177 = vmatpush1.bf16.msra.mxu0 %v156
    %178 = vmatprep.subr.bf16.mxu0 0
    %179 = vmatpush1.bf16.msra.mxu0 %v157
    %180 = vmatprep.subr.bf16.mxu0 0
    %181 = vmatpush1.bf16.msra.mxu0 %v158
    %182 = vmatprep.subr.bf16.mxu0 0
    %183 = vmatpush1.bf16.msra.mxu0 %v159
    %184 = vmatprep.subr.bf16.mxu0 0
    %185 = vmatpush1.bf16.msra.mxu0 0
    %186 = vmatprep.subr.bf16.mxu0 0
    %187 = vmatpush1.bf16.msra.mxu0 0
    %188 = vmatprep.subr.bf16.mxu0 0
    %189 = vmatpush1.bf16.msra.mxu0 0
    %190 = vmatprep.subr.bf16.mxu0 0
    %191 = vmatpush1.bf16.msra.mxu0 0
    %192 = vmatprep.subr.bf16.mxu0 0
    %193 = vmatpush1.bf16.msra.mxu0 0
    %194 = vmatprep.subr.bf16.mxu0 0
    %195 = vmatpush1.bf16.msra.mxu0 0
    %196 = vmatprep.subr.bf16.mxu0 0
    %197 = vmatpush1.bf16.msra.mxu0 0
    %198 = vmatprep.subr.bf16.mxu0 0
    %199 = vmatpush1.bf16.msra.mxu0 0
    %200 = vmatprep.mubr.bf16.mxu0 0
    %201 = vmatmul.mubr.bf16.gmra.mrb[0].mxu0 %v96
    %v202 = vpop.f32.mrb[0].mxu0
    %v203 = vadd.f32 %v118, %v202
    %v204 = vpop.f32.mrb[0].mxu0
    %v205 = vpop.f32.mrb[0].mxu0
    %v206 = vpop.f32.mrb[0].mxu0
    %207 = vdwg.mxu0
    %v208 = vmax.f32 %v203, 0.0
    %v209 = vpack.c.bf16 %v208, %v208
    %v210 = vld [vmem:[%s5] sm:$0xf]
    %v211 = vld [vmem:[%s5 + $0x4] sm:$0xf]
    %v212 = vld [vmem:[%s5 + $0x8] sm:$0xf]
    %v213 = vld [vmem:[%s5 + $0xc] sm:$0xf]
    %v214 = vld [vmem:[%s5 + $0x10] sm:$0xf]
    %v215 = vld [vmem:[%s5 + $0x14] sm:$0xf]
    %v216 = vld [vmem:[%s5 + $0x18] sm:$0xf]
    %v217 = vld [vmem:[%s5 + $0x1c] sm:$0xf]
    %v218 = vld [vmem:[%s5 + $0x20] sm:$0xf]
    %v219 = vld [vmem:[%s5 + $0x24] sm:$0xf]
    %v220 = vld [vmem:[%s5 + $0x28] sm:$0xf]
    %v221 = vld [vmem:[%s5 + $0x2c] sm:$0xf]
    %v222 = vld [vmem:[%s5 + $0x30] sm:$0xf]
    %v223 = vld [vmem:[%s5 + $0x34] sm:$0xf]
    %v224 = vld [vmem:[%s5 + $0x38] sm:$0xf]
    %v225 = vld [vmem:[%s5 + $0x3c] sm:$0xf]
    %v226 = vld [vmem:[%s6] sm:$0x1]
    %v228 = vlaneseq
    %v229 = vshrl.u32 %v228, 7
    %v230 = vsub.s32 0, %v229
    %v231 = vrot.slane %v226, %v230
    %v249 = vunpack.c.l.b16 %v210
    %v250 = vunpack.c.l.b16 %v211
    %v251 = vunpack.c.l.b16 %v212
    %v252 = vunpack.c.l.b16 %v213
    %v253 = vunpack.c.l.b16 %v214
    %v254 = vunpack.c.l.b16 %v215
    %v255 = vunpack.c.l.b16 %v216
    %v256 = vunpack.c.l.b16 %v217
    %v257 = vunpack.c.l.b16 %v218
    %v258 = vunpack.c.l.b16 %v219
    %v259 = vunpack.c.l.b16 %v220
    %v260 = vunpack.c.l.b16 %v221
    %v261 = vunpack.c.l.b16 %v222
    %v262 = vunpack.c.l.b16 %v223
    %v263 = vunpack.c.l.b16 %v224
    %v264 = vunpack.c.l.b16 %v225
    %v265 = vpack.c.b16 %v250, %v249
    %v266 = vpack.c.b16 %v252, %v251
    %v267 = vpack.c.b16 %v254, %v253
    %v268 = vpack.c.b16 %v256, %v255
    %v269 = vpack.c.b16 %v258, %v257
    %v270 = vpack.c.b16 %v260, %v259
    %v271 = vpack.c.b16 %v262, %v261
    %v272 = vpack.c.b16 %v264, %v263
    %281 = vmatprep.subr.bf16.mxu0 0
    %282 = vmatpush1.bf16.msra.mxu0 %v265
    %283 = vmatprep.subr.bf16.mxu0 0
    %284 = vmatpush1.bf16.msra.mxu0 %v266
    %285 = vmatprep.subr.bf16.mxu0 0
    %286 = vmatpush1.bf16.msra.mxu0 %v267
    %287 = vmatprep.subr.bf16.mxu0 0
    %288 = vmatpush1.bf16.msra.mxu0 %v268
    %289 = vmatprep.subr.bf16.mxu0 0
    %290 = vmatpush1.bf16.msra.mxu0 %v269
    %291 = vmatprep.subr.bf16.mxu0 0
    %292 = vmatpush1.bf16.msra.mxu0 %v270
    %293 = vmatprep.subr.bf16.mxu0 0
    %294 = vmatpush1.bf16.msra.mxu0 %v271
    %295 = vmatprep.subr.bf16.mxu0 0
    %296 = vmatpush1.bf16.msra.mxu0 %v272
    %297 = vmatprep.subr.bf16.mxu0 0
    %298 = vmatpush1.bf16.msra.mxu0 0
    %299 = vmatprep.subr.bf16.mxu0 0
    %300 = vmatpush1.bf16.msra.mxu0 0
    %301 = vmatprep.subr.bf16.mxu0 0
    %302 = vmatpush1.bf16.msra.mxu0 0
    %303 = vmatprep.subr.bf16.mxu0 0
    %304 = vmatpush1.bf16.msra.mxu0 0
    %305 = vmatprep.subr.bf16.mxu0 0
    %306 = vmatpush1.bf16.msra.mxu0 0
    %307 = vmatprep.subr.bf16.mxu0 0
    %308 = vmatpush1.bf16.msra.mxu0 0
    %309 = vmatprep.subr.bf16.mxu0 0
    %310 = vmatpush1.bf16.msra.mxu0 0
    %311 = vmatprep.subr.bf16.mxu0 0
    %312 = vmatpush1.bf16.msra.mxu0 0
    %313 = vmatprep.mubr.bf16.mxu0 0
    %314 = vmatmul.mubr.bf16.gmra.mrb[0].mxu0 %v209
    %v315 = vpop.f32.mrb[0].mxu0
    %v316 = vadd.f32 %v231, %v315
    %v317 = vpop.f32.mrb[0].mxu0
    %v318 = vpop.f32.mrb[0].mxu0
    %v319 = vpop.f32.mrb[0].mxu0
    %320 = vdwg.mxu0
    %vm321 = vcmask 261120
    %v322 = vsel %vm321, %v316, 0.0
    %323 = vadd.xlane.f32.xlu0 %v322
    %v324 = vpop.xlane.xlu0 %323
    %v325 = vmul.f32 %v324, 0.03125
    %v326 = vmul.f32 %v316, %v316
    %v327 = vsel %vm321, %v326, 0.0
    %328 = vadd.xlane.f32.xlu0 %v327
    %v329 = vpop.xlane.xlu0 %328
    %v330 = vmul.f32 %v329, 0.03125
    %v331 = vmul.f32 %v325, %v325
    %v332 = vsub.f32 %v330, %v331
    %v333 = vmax.f32 %v332, 0.0
    %v334 = vsub.f32 %v316, %v325
    %v335 = vadd.f32 %v333, 1e-05
    %v336 = vrsqrt.pop %v335
    %v337 = vmul.f32 %v334, %v336
    %v338 = vld [vmem:[%s7] sm:$0x1]
    %v340 = vlaneseq
    %v341 = vshrl.u32 %v340, 7
    %v342 = vsub.s32 0, %v341
    %v343 = vrot.slane %v338, %v342
    %v345 = vmul.f32 %v337, %v343
    %v346 = vld [vmem:[%s8] sm:$0x1]
    %v348 = vlaneseq
    %v349 = vshrl.u32 %v348, 7
    %v350 = vsub.s32 0, %v349
    %v351 = vrot.slane %v346, %v350
    %v353 = vadd.f32 %v345, %v351
    %354 = vst.msk [vmem:[#allocation2] sm:$0xff] %vm321, %v353
    // Predicated region
    $region38: #{tpu_custom_call.1} parent=1 // pred_check
      _
    $region39: #{tpu_custom_call.1} parent=1 // pred_check_branch
      %356 = sbr.rel (0) target = $region41
    $region40: #{tpu_custom_call.1} parent=1 // pred_region
      %s358 = ssub.s32 128, 128
      %359 = vsyncadd [#allocation3], %s358
      %s361 = sshll.u32 [#allocation2], 4
      %s362 = int_to_ptr.vmem [resolvable:$true] %s361
      %364 = dma.vmem_to_hbm [thread:$0]  %s362, 128, %s9, [#allocation3]
    $region41: #{tpu_custom_call.1} parent=1 // pred_fallthru
      _
    // Predicated region
    $region42: #{tpu_custom_call.1} parent=1 // pred_check
      _
    $region43: #{tpu_custom_call.1} parent=1 // pred_check_branch
      %366 = sbr.rel (0) target = $region45
    $region44: #{tpu_custom_call.1} parent=1 // pred_region
      %367 = dma.done [#allocation3], 128
    $region45: #{tpu_custom_call.1} parent=1 // pred_fallthru
      _
    %368 = vsyncpa [#allocation3], 1

</llo_original>
